<compile_context>
chip_gen: v7x
topology: tpu7x:2x2x1
jax: 0.10.0
libtpu: 0.0.40
codegen_flags: <defaults>
</compile_context>

<pallas_src>
import functools

import jax
import jax.numpy as jnp
from jax.experimental import pallas as pl
from jax.experimental.pallas import tpu as pltpu


def _sge_kernel(x_ref, w_ref, b_ref, o_ref, *, hw, hw_pad):
    """One (batch-tile, group-tile) block per grid step.

    x_ref: (tb, tg, cpg, hw_pad)   input, spatial flattened onto the lane axis
    w_ref: (1, tg, 1)              per-group scale
    b_ref: (1, tg, 1)              per-group shift
    o_ref: (tb, tg, cpg, hw_pad)   output
    """
    x = x_ref[...].astype(jnp.float32)                        # (tb, tg, cpg, hw_pad)

    inv_hw = 1.0 / hw
    # Per-channel spatial mean (lane reduce).  Padded lanes hold zeros, so the sum
    # over hw_pad lanes divided by the true hw is exact.
    avg = jnp.sum(x, axis=3, keepdims=True) * inv_hw           # (tb, tg, cpg, 1)

    # Channel-weighted spatial map, reduced over the channels of each group.
    xn = jnp.sum(x * avg, axis=2)                              # (tb, tg, hw_pad)

    # Per-(batch, group) spatial normalization: mean, then unbiased std (ddof=1)
    # matching torch.Tensor.std.  Padded lanes contribute zero to both sums.
    mu = jnp.sum(xn, axis=2, keepdims=True) * inv_hw           # (tb, tg, 1)
    diff = xn - mu
    if hw_pad != hw:
        lane = jax.lax.broadcasted_iota(jnp.int32, diff.shape, 2)
        diff = jnp.where(lane < hw, diff, 0.0)
    # NOTE: torch yields NaN for h*w == 1 (unbiased std of one sample); we guard
    # the divisor instead of reproducing the NaN.
    var = jnp.sum(diff * diff, axis=2, keepdims=True) * (1.0 / max(hw - 1, 1))
    inv_std = 1.0 / (jnp.sqrt(var) + 1e-5)                     # (tb, tg, 1) tiny divide
    t = diff * inv_std

    # Learnable per-group scale/shift, then the sigmoid gate (tanh form -> EUP,
    # no full-width VALU divide).
    t = t * w_ref[...] + b_ref[...]                            # (1, tg, 1) broadcasts
    gate = 0.5 * (jnp.tanh(0.5 * t) + 1.0)

    o_ref[...] = (x * gate[:, :, None, :]).astype(o_ref.dtype)


def _pick_tiles(b, groups, cpg, hw_pad, itemsize,
                target=1 << 20, min_block=256 << 10):
    """Pick (batch_tile, group_tile) so each grid step reads ~`target` bytes."""
    group_bytes = cpg * hw_pad * itemsize
    image_bytes = groups * group_bytes

    # Tile the group axis only when a single image overshoots the target.
    tg = groups
    if image_bytes > target and groups > 1:
        divs = [d for d in range(1, groups + 1) if groups % d == 0]
        fitting = [d for d in divs if d * group_bytes <= target]
        tg = max(fitting) if fitting else 1
    block_bytes = tg * group_bytes

    # Coalesce batch elements when blocks are small (amortize per-step overhead),
    # but prefer the smallest tile that still reaches `min_block` so the grid
    # keeps several steps per TensorCore.
    divs = [d for d in range(1, b + 1) if b % d == 0]
    fitting = [d for d in divs if d * block_bytes <= target] or [1]
    big_enough = [d for d in fitting if d * block_bytes >= min_block]
    tb = min(big_enough) if big_enough else max(fitting)
    return tb, tg


def spatial_group_enhance_forward(x_nchw, weight, bias, groups):
    """Forward pass matching SpatialGroupEnhance.forward.

    x_nchw: (b, c, h, w), c % groups == 0
    weight: `groups` elements (PyTorch Parameter shaped (1, groups, 1, 1))
    bias:   `groups` elements
    Returns (b, c, h, w) in x_nchw.dtype.
    """
    b, c, h, w = x_nchw.shape
    assert c % groups == 0, "channels must be divisible by groups"
    cpg = c // groups
    hw = h * w
    hw_pad = -(-hw // 128) * 128
    itemsize = x_nchw.dtype.itemsize

    # Free reshape; optional one-time zero-pad of the spatial axis so the minor
    # block dim is a multiple of 128 (unmasked stores).
    x_r = x_nchw.reshape(b, groups, cpg, hw)
    if hw_pad != hw:
        x_r = jnp.pad(x_r, ((0, 0), (0, 0), (0, 0), (0, hw_pad - hw)))

    tb, tg = _pick_tiles(b, groups, cpg, hw_pad, itemsize)
    n_gt = groups // tg

    w_r = jnp.asarray(weight, jnp.float32).reshape(n_gt, tg, 1)
    b_r = jnp.asarray(bias, jnp.float32).reshape(n_gt, tg, 1)

    # Explicit VMEM budget: double-buffered input + output blocks (with sublane
    # padding of cpg to the dtype tile granule) plus in-kernel f32 temporaries.
    sub = 8 * max(1, 4 // itemsize)
    cpg_io = -(-cpg // sub) * sub
    cpg_f32 = -(-cpg // 8) * 8
    io_block = tb * tg * cpg_io * hw_pad * itemsize
    f32_slab = tb * tg * cpg_f32 * hw_pad * 4
    vmem_est = 4 * io_block + 3 * f32_slab + 4 * tb * tg * hw_pad * 4 + (2 << 20)
    vmem_limit = None
    if vmem_est > (16 << 20):                       # above the v5e scoped default
        vmem_limit = int(min(max(vmem_est, 32 << 20), 64 << 20))

    kernel = functools.partial(_sge_kernel, hw=hw, hw_pad=hw_pad)
    cost = pl.CostEstimate(
        flops=int(7 * b * c * hw),
        transcendentals=int(b * groups * hw),
        bytes_accessed=int(2 * b * c * hw * itemsize + 8 * groups),
    )

    out = pl.pallas_call(
        kernel,
        out_shape=jax.ShapeDtypeStruct((b, groups, cpg, hw_pad), x_nchw.dtype),
        grid_spec=pltpu.PrefetchScalarGridSpec(
            num_scalar_prefetch=0,
            grid=(b // tb, n_gt),
            in_specs=[
                pl.BlockSpec((tb, tg, cpg, hw_pad), lambda bi, gj: (bi, gj, 0, 0)),
                pl.BlockSpec((1, tg, 1), lambda bi, gj: (gj, 0, 0)),
                pl.BlockSpec((1, tg, 1), lambda bi, gj: (gj, 0, 0)),
            ],
            out_specs=pl.BlockSpec((tb, tg, cpg, hw_pad),
                                   lambda bi, gj: (bi, gj, 0, 0)),
        ),
        compiler_params=pltpu.CompilerParams(
            dimension_semantics=("parallel", "parallel"),
            vmem_limit_bytes=vmem_limit),
        cost_estimate=cost,
    )(x_r, w_r, b_r)

    if hw_pad != hw:
        out = out[..., :hw]
    return out.reshape(b, c, h, w)


def _reference(x, weight, bias, groups):
    """Plain-JAX faithful transcription of the PyTorch forward."""
    b, c, h, w = x.shape
    xg = x.reshape(b * groups, c // groups, h, w)
    avg = jnp.mean(xg, axis=(2, 3), keepdims=True)
    xn = jnp.sum(xg * avg, axis=1, keepdims=True)            # (b*g, 1, h, w)
    t = xn.reshape(b * groups, -1)
    t = t - jnp.mean(t, axis=1, keepdims=True)
    std = jnp.std(t, axis=1, keepdims=True, ddof=1) + 1e-5    # torch.std is unbiased
    t = t / std
    t = t.reshape(b, groups, h, w)
    t = t * weight.reshape(1, groups, 1, 1) + bias.reshape(1, groups, 1, 1)
    t = t.reshape(b * groups, 1, h, w)
    out = xg * jax.nn.sigmoid(t)
    return out.reshape(b, c, h, w)


if __name__ == "__main__":
    key = jax.random.PRNGKey(0)
    kx, kw, kb, kx2 = jax.random.split(key, 4)
    groups = 4

    # Module init is weight=zeros / bias=ones (constant gate); use random values
    # so the full statistics path is exercised.
    weight = 0.5 * jax.random.normal(kw, (groups,), dtype=jnp.float32)
    bias = 0.5 * jax.random.normal(kb, (groups,), dtype=jnp.float32)

    # Case 1: lane-aligned spatial size (16*16 = 256 lanes).
    b, c, h, w = 2, 16, 16, 16
    x = jax.random.normal(kx, (b, c, h, w), dtype=jnp.float32)
    out = jax.block_until_ready(spatial_group_enhance_forward(x, weight, bias, groups))
    ref = jax.block_until_ready(_reference(x, weight, bias, groups))
    assert out.shape == (b, c, h, w)
    assert jnp.allclose(out, ref, atol=1e-4, rtol=1e-4), \
        float(jnp.max(jnp.abs(out - ref)))

    # Case 2: non-128-multiple spatial size (12*12 = 144 -> padded to 256 lanes).
    h2 = w2 = 12
    x2 = jax.random.normal(kx2, (b, c, h2, w2), dtype=jnp.float32)
    out2 = jax.block_until_ready(spatial_group_enhance_forward(x2, weight, bias, groups))
    ref2 = jax.block_until_ready(_reference(x2, weight, bias, groups))
    assert out2.shape == (b, c, h2, w2)
    assert jnp.allclose(out2, ref2, atol=1e-4, rtol=1e-4), \
        float(jnp.max(jnp.abs(out2 - ref2)))

    print("KERNEL_OK")
</pallas_src>

<mosaic_0001>
module attributes {stable_mosaic.version = 11 : i64} {
  func.func @_sge_kernel(%arg0: i32, %arg1: i32, %arg2: memref<2x4x4x256xf32, #tpu.memory_space<vmem>>, %arg3: memref<1x4x1xf32, #tpu.memory_space<vmem>>, %arg4: memref<1x4x1xf32, #tpu.memory_space<vmem>>, %arg5: memref<2x4x4x256xf32, #tpu.memory_space<vmem>>) attributes {dimension_semantics = [#tpu.dimension_semantics<parallel>, #tpu.dimension_semantics<parallel>], iteration_bounds = array<i64: 1, 1>, scalar_prefetch = 0 : i64, scratch_operands = 0 : i64, tpu.core_type = #tpu.core_type<tc>, window_params = [{transform_indices = @transform_0, window_bounds = array<i64: 2, 4, 4, 256>}, {transform_indices = @transform_1, window_bounds = array<i64: 1, 4, 1>}, {transform_indices = @transform_2, window_bounds = array<i64: 1, 4, 1>}, {transform_indices = @transform_3, window_bounds = array<i64: 2, 4, 4, 256>}]} {
    %c0 = arith.constant 0 : index
    %c0_0 = arith.constant 0 : index
    %c0_1 = arith.constant 0 : index
    %c0_2 = arith.constant 0 : index
    %0 = vector.load %arg2[%c0, %c0_0, %c0_1, %c0_2] : memref<2x4x4x256xf32, #tpu.memory_space<vmem>>, vector<2x4x4x256xf32>
    %cst = arith.constant dense<0.000000e+00> : vector<2x4x4xf32>
    %1 = vector.multi_reduction <add>, %0, %cst [3] : vector<2x4x4x256xf32> to vector<2x4x4xf32>
    %2 = vector.shape_cast %1 : vector<2x4x4xf32> to vector<2x4x4x1xf32>
    %cst_3 = arith.constant 3.906250e-03 : f32
    %3 = vector.broadcast %cst_3 : f32 to vector<2x4x4x1xf32>
    %4 = arith.mulf %2, %3 : vector<2x4x4x1xf32>
    %5 = vector.broadcast %4 : vector<2x4x4x1xf32> to vector<2x4x4x256xf32>
    %6 = arith.mulf %0, %5 : vector<2x4x4x256xf32>
    %cst_4 = arith.constant dense<0.000000e+00> : vector<2x4x256xf32>
    %7 = vector.multi_reduction <add>, %6, %cst_4 [2] : vector<2x4x4x256xf32> to vector<2x4x256xf32>
    %cst_5 = arith.constant dense<0.000000e+00> : vector<2x4xf32>
    %8 = vector.multi_reduction <add>, %7, %cst_5 [2] : vector<2x4x256xf32> to vector<2x4xf32>
    %9 = vector.shape_cast %8 : vector<2x4xf32> to vector<2x4x1xf32>
    %cst_6 = arith.constant 3.906250e-03 : f32
    %10 = vector.broadcast %cst_6 : f32 to vector<2x4x1xf32>
    %11 = arith.mulf %9, %10 : vector<2x4x1xf32>
    %12 = vector.broadcast %11 : vector<2x4x1xf32> to vector<2x4x256xf32>
    %13 = arith.subf %7, %12 : vector<2x4x256xf32>
    %14 = arith.mulf %13, %13 : vector<2x4x256xf32>
    %cst_7 = arith.constant dense<0.000000e+00> : vector<2x4xf32>
    %15 = vector.multi_reduction <add>, %14, %cst_7 [2] : vector<2x4x256xf32> to vector<2x4xf32>
    %16 = vector.shape_cast %15 : vector<2x4xf32> to vector<2x4x1xf32>
    %cst_8 = arith.constant 0.00392156886 : f32
    %17 = vector.broadcast %cst_8 : f32 to vector<2x4x1xf32>
    %18 = arith.mulf %16, %17 : vector<2x4x1xf32>
    %19 = math.sqrt %18 : vector<2x4x1xf32>
    %cst_9 = arith.constant 9.99999974E-6 : f32
    %20 = vector.broadcast %cst_9 : f32 to vector<2x4x1xf32>
    %21 = arith.addf %19, %20 : vector<2x4x1xf32>
    %cst_10 = arith.constant 1.000000e+00 : f32
    %22 = vector.broadcast %cst_10 : f32 to vector<2x4x1xf32>
    %23 = arith.divf %22, %21 : vector<2x4x1xf32>
    %24 = vector.broadcast %23 : vector<2x4x1xf32> to vector<2x4x256xf32>
    %25 = arith.mulf %13, %24 : vector<2x4x256xf32>
    %c0_11 = arith.constant 0 : index
    %c0_12 = arith.constant 0 : index
    %c0_13 = arith.constant 0 : index
    %26 = vector.load %arg3[%c0_11, %c0_12, %c0_13] : memref<1x4x1xf32, #tpu.memory_space<vmem>>, vector<1x4x1xf32>
    %27 = vector.broadcast %26 : vector<1x4x1xf32> to vector<2x4x256xf32>
    %28 = arith.mulf %25, %27 : vector<2x4x256xf32>
    %c0_14 = arith.constant 0 : index
    %c0_15 = arith.constant 0 : index
    %c0_16 = arith.constant 0 : index
    %29 = vector.load %arg4[%c0_14, %c0_15, %c0_16] : memref<1x4x1xf32, #tpu.memory_space<vmem>>, vector<1x4x1xf32>
    %30 = vector.broadcast %29 : vector<1x4x1xf32> to vector<2x4x256xf32>
    %31 = arith.addf %28, %30 : vector<2x4x256xf32>
    %cst_17 = arith.constant 5.000000e-01 : f32
    %32 = vector.broadcast %cst_17 : f32 to vector<2x4x256xf32>
    %33 = arith.mulf %32, %31 : vector<2x4x256xf32>
    %34 = math.tanh %33 : vector<2x4x256xf32>
    %cst_18 = arith.constant 1.000000e+00 : f32
    %35 = vector.broadcast %cst_18 : f32 to vector<2x4x256xf32>
    %36 = arith.addf %34, %35 : vector<2x4x256xf32>
    %cst_19 = arith.constant 5.000000e-01 : f32
    %37 = vector.broadcast %cst_19 : f32 to vector<2x4x256xf32>
    %38 = arith.mulf %37, %36 : vector<2x4x256xf32>
    %39 = vector.shape_cast %38 : vector<2x4x256xf32> to vector<2x4x1x256xf32>
    %40 = vector.broadcast %39 : vector<2x4x1x256xf32> to vector<2x4x4x256xf32>
    %41 = arith.mulf %0, %40 : vector<2x4x4x256xf32>
    %c0_20 = arith.constant 0 : index
    %c0_21 = arith.constant 0 : index
    %c0_22 = arith.constant 0 : index
    %c0_23 = arith.constant 0 : index
    %42 = vector.load %arg5[%c0_20, %c0_21, %c0_22, %c0_23] : memref<2x4x4x256xf32, #tpu.memory_space<vmem>>, vector<2x4x4x256xf32>
    tpu.vector_store %arg5[%c0_20, %c0_21, %c0_22, %c0_23], %41 {strides = array<i32>} : memref<2x4x4x256xf32, #tpu.memory_space<vmem>>, vector<2x4x4x256xf32>,
    return
  }
  func.func @transform_0(%arg0: i32, %arg1: i32) -> (i32, i32, i32, i32) {
    %c0_i32 = arith.constant 0 : i32
    %c0_i32_0 = arith.constant 0 : i32
    %c0_i32_1 = arith.constant 0 : i32
    return %arg0, %arg1, %c0_i32, %c0_i32_0 : i32, i32, i32, i32
  }
  func.func @transform_1(%arg0: i32, %arg1: i32) -> (i32, i32, i32) {
    %c0_i32 = arith.constant 0 : i32
    %c0_i32_0 = arith.constant 0 : i32
    %c0_i32_1 = arith.constant 0 : i32
    return %arg1, %c0_i32, %c0_i32_0 : i32, i32, i32
  }
  func.func @transform_2(%arg0: i32, %arg1: i32) -> (i32, i32, i32) {
    %c0_i32 = arith.constant 0 : i32
    %c0_i32_0 = arith.constant 0 : i32
    %c0_i32_1 = arith.constant 0 : i32
    return %arg1, %c0_i32, %c0_i32_0 : i32, i32, i32
  }
  func.func @transform_3(%arg0: i32, %arg1: i32) -> (i32, i32, i32, i32) {
    %c0_i32 = arith.constant 0 : i32
    %c0_i32_0 = arith.constant 0 : i32
    %c0_i32_1 = arith.constant 0 : i32
    return %arg0, %arg1, %c0_i32, %c0_i32_0 : i32, i32, i32, i32
  }
}

</mosaic_0001>

<llo_original>
// kernel: tpu_custom_call.1
$region0: #{tpu_custom_call.1}
  #allocation0 [shape = 'u32[]', space=smem, size = 0x4, offset = 0x4, fixed_abs, tag = 'smem constant byte address 0x4 - core index']
  #allocation1 [shape = 'u32[144,128]{1,0:T(1,128)}', space=vmem, size = 0x12000, scoped, tag = 'internal scratch']
  %s0 = inlined_call_operand.hbm [shape: f32[2,4,4,256], index: 0, kind: input, shape index: {}]
  %s1 = inlined_call_operand.vmem [shape: f32[1,4,1], index: 1, kind: input, shape index: {}]
  %s2 = inlined_call_operand.vmem [shape: f32[1,4,1], index: 2, kind: input, shape index: {}]
  %s3 = inlined_call_operand.hbm [shape: f32[2,4,4,256], index: 3, kind: output, shape index: {}]
  %s4 = sld [smem:[#allocation0]]
  $region26: #{tpu_custom_call.1} parent=0
    _
  %s6 = ssub.s32 1, %s4
  %s7 = scalar_select 0, %s6, %s4
  $region1: #{tpu_custom_call.1} parent=0
    #allocation2 [shape = 'u8[32768]{0}', space=vmem, size = 0x8000, scoped, tag = 'input window, operand 0, single buffered']
    #allocation3 [shape = 's32[1]{0}', space=sflag, size = 0x4, scoped, tag = 'scoped memory for tpu_custom_call.1']
    #allocation4 [shape = 's32[1]{0}', space=sflag, size = 0x4, scoped, tag = 'scoped memory for tpu_custom_call.1']
    #allocation5 [shape = 'u8[32768]{0}', space=vmem, size = 0x8000, scoped, tag = 'output window, operand 0, single buffered']
    %8 = vsyncpa [#allocation3], 0
    %9 = vsyncpa [#allocation4], 0
    // Predicated region
    $region2: #{tpu_custom_call.1} parent=1 // pred_check
      _
    $region3: #{tpu_custom_call.1} parent=1 // pred_check_branch
      %11 = sbr.rel (0) target = $region5
    $region4: #{tpu_custom_call.1} parent=1 // pred_region
      %s13 = ssub.s32 1024, 1024
      %14 = vsyncadd [#allocation3], %s13
      %s15 = sshll.u32 [#allocation2], 4
      %s16 = int_to_ptr.vmem [resolvable:$true] %s15
      %21 = dma.hbm_to_vmem [thread:$0]  %s0, 1024, %s16, [#allocation3], 128, 128, 8
    $region5: #{tpu_custom_call.1} parent=1 // pred_fallthru
      _
    // Predicated region
    $region6: #{tpu_custom_call.1} parent=1 // pred_check
      _
    $region7: #{tpu_custom_call.1} parent=1 // pred_check_branch
      %23 = sbr.rel (0) target = $region9
    $region8: #{tpu_custom_call.1} parent=1 // pred_region
      _
    $region9: #{tpu_custom_call.1} parent=1 // pred_fallthru
      _
    // Predicated region
    $region10: #{tpu_custom_call.1} parent=1 // pred_check
      _
    $region11: #{tpu_custom_call.1} parent=1 // pred_check_branch
      %25 = sbr.rel (0) target = $region13
    $region12: #{tpu_custom_call.1} parent=1 // pred_region
      _
    $region13: #{tpu_custom_call.1} parent=1 // pred_fallthru
      _
    // Predicated region
    $region14: #{tpu_custom_call.1} parent=1 // pred_check
      _
    $region15: #{tpu_custom_call.1} parent=1 // pred_check_branch
      %27 = sbr.rel (0) target = $region17
    $region16: #{tpu_custom_call.1} parent=1 // pred_region
      %28 = dma.done [#allocation3], 1024
    $region17: #{tpu_custom_call.1} parent=1 // pred_fallthru
      _
    %v29 = vld [vmem:[#allocation2] sm:$0xff]
    %v30 = vld [vmem:[#allocation2 + $0x8] sm:$0xff]
    %v31 = vld [vmem:[#allocation2 + $0x10] sm:$0xff]
    %v32 = vld [vmem:[#allocation2 + $0x18] sm:$0xff]
    %v33 = vld [vmem:[#allocation2 + $0x20] sm:$0xff]
    %v34 = vld [vmem:[#allocation2 + $0x28] sm:$0xff]
    %v35 = vld [vmem:[#allocation2 + $0x30] sm:$0xff]
    %v36 = vld [vmem:[#allocation2 + $0x38] sm:$0xff]
    %v45 = vcombine.high %v29, %v29
    %v46 = vcombine.high %v30, %v30
    %v47 = vcombine.high %v31, %v31
    %v48 = vcombine.high %v32, %v32
    %v49 = vcombine.high %v33, %v33
    %v50 = vcombine.high %v34, %v34
    %v51 = vcombine.high %v35, %v35
    %v52 = vcombine.high %v36, %v36
    %vm61 = vcmask 1043456
    %v62 = vsel %vm61, %v29, 0.0
    %v63 = vsel %vm61, %v45, 0.0
    %v64 = vadd.f32 %v62, %v63
    %65 = vadd.xlane.f32.xlu0 %v64
    %v66 = vpop.xlane.xlu0 %65
    %v67 = vsel %vm61, %v30, 0.0
    %v68 = vsel %vm61, %v46, 0.0
    %v69 = vadd.f32 %v67, %v68
    %70 = vadd.xlane.f32.xlu0 %v69
    %v71 = vpop.xlane.xlu0 %70
    %v72 = vsel %vm61, %v31, 0.0
    %v73 = vsel %vm61, %v47, 0.0
    %v74 = vadd.f32 %v72, %v73
    %75 = vadd.xlane.f32.xlu0 %v74
    %v76 = vpop.xlane.xlu0 %75
    %v77 = vsel %vm61, %v32, 0.0
    %v78 = vsel %vm61, %v48, 0.0
    %v79 = vadd.f32 %v77, %v78
    %80 = vadd.xlane.f32.xlu0 %v79
    %v81 = vpop.xlane.xlu0 %80
    %v82 = vsel %vm61, %v33, 0.0
    %v83 = vsel %vm61, %v49, 0.0
    %v84 = vadd.f32 %v82, %v83
    %85 = vadd.xlane.f32.xlu0 %v84
    %v86 = vpop.xlane.xlu0 %85
    %v87 = vsel %vm61, %v34, 0.0
    %v88 = vsel %vm61, %v50, 0.0
    %v89 = vadd.f32 %v87, %v88
    %90 = vadd.xlane.f32.xlu0 %v89
    %v91 = vpop.xlane.xlu0 %90
    %v92 = vsel %vm61, %v35, 0.0
    %v93 = vsel %vm61, %v51, 0.0
    %v94 = vadd.f32 %v92, %v93
    %95 = vadd.xlane.f32.xlu0 %v94
    %v96 = vpop.xlane.xlu0 %95
    %v97 = vsel %vm61, %v36, 0.0
    %v98 = vsel %vm61, %v52, 0.0
    %v99 = vadd.f32 %v97, %v98
    %100 = vadd.xlane.f32.xlu0 %v99
    %v101 = vpop.xlane.xlu0 %100
    %v102 = vmul.f32 %v66, 0.00390625
    %v103 = vmul.f32 %v71, 0.00390625
    %v104 = vmul.f32 %v76, 0.00390625
    %v105 = vmul.f32 %v81, 0.00390625
    %v106 = vmul.f32 %v86, 0.00390625
    %v107 = vmul.f32 %v91, 0.00390625
    %v108 = vmul.f32 %v96, 0.00390625
    %v109 = vmul.f32 %v101, 0.00390625
    %v119 = vunpack.c.l.s4 839922192
    %v120 = vunpack.c.0.s8 %v119
    %v121 = vlaneseq
    %v122 = vshrl.u32 %v121, 7
    %v123 = vsub.s32 %v120, %v122
    %v124 = vrot.slane %v102, %v123
    %v126 = vunpack.c.l.s4 839922192
    %v127 = vunpack.c.0.s8 %v126
    %v128 = vlaneseq
    %v129 = vshrl.u32 %v128, 7
    %v130 = vsub.s32 %v127, %v129
    %v131 = vrot.slane %v103, %v130
    %v133 = vunpack.c.l.s4 839922192
    %v134 = vunpack.c.0.s8 %v133
    %v135 = vlaneseq
    %v136 = vshrl.u32 %v135, 7
    %v137 = vsub.s32 %v134, %v136
    %v138 = vrot.slane %v104, %v137
    %v140 = vunpack.c.l.s4 839922192
    %v141 = vunpack.c.0.s8 %v140
    %v142 = vlaneseq
    %v143 = vshrl.u32 %v142, 7
    %v144 = vsub.s32 %v141, %v143
    %v145 = vrot.slane %v105, %v144
    %v147 = vunpack.c.l.s4 839922192
    %v148 = vunpack.c.0.s8 %v147
    %v149 = vlaneseq
    %v150 = vshrl.u32 %v149, 7
    %v151 = vsub.s32 %v148, %v150
    %v152 = vrot.slane %v106, %v151
    %v154 = vunpack.c.l.s4 839922192
    %v155 = vunpack.c.0.s8 %v154
    %v156 = vlaneseq
    %v157 = vshrl.u32 %v156, 7
    %v158 = vsub.s32 %v155, %v157
    %v159 = vrot.slane %v107, %v158
    %v161 = vunpack.c.l.s4 839922192
    %v162 = vunpack.c.0.s8 %v161
    %v163 = vlaneseq
    %v164 = vshrl.u32 %v163, 7
    %v165 = vsub.s32 %v162, %v164
    %v166 = vrot.slane %v108, %v165
    %v168 = vunpack.c.l.s4 839922192
    %v169 = vunpack.c.0.s8 %v168
    %v170 = vlaneseq
    %v171 = vshrl.u32 %v170, 7
    %v172 = vsub.s32 %v169, %v171
    %v173 = vrot.slane %v109, %v172
    %v182 = vmul.f32 %v29, %v124
    %v183 = vmul.f32 %v30, %v131
    %v184 = vmul.f32 %v31, %v138
    %v185 = vmul.f32 %v32, %v145
    %v186 = vmul.f32 %v33, %v152
    %v187 = vmul.f32 %v34, %v159
    %v188 = vmul.f32 %v35, %v166
    %v189 = vmul.f32 %v36, %v173
    %v198 = vcombine.high %v182, %v182
    %v199 = vcombine.high %v183, %v183
    %v200 = vcombine.high %v184, %v184
    %v201 = vcombine.high %v185, %v185
    %v202 = vcombine.high %v186, %v186
    %v203 = vcombine.high %v187, %v187
    %v204 = vcombine.high %v188, %v188
    %v205 = vcombine.high %v189, %v189
    %v214 = vsel %vm61, %v182, 0.0
    %v215 = vrot.slane %v214, 4
    %v216 = vadd.f32 %v214, %v215
    %v217 = vrot.slane %v216, 2
    %v218 = vadd.f32 %v216, %v217
    %v219 = vrot.slane %v218, 1
    %v220 = vadd.f32 %v218, %v219
    %v221 = vsel %vm61, %v198, 0.0
    %v222 = vrot.slane %v221, 4
    %v223 = vadd.f32 %v221, %v222
    %v224 = vrot.slane %v223, 2
    %v225 = vadd.f32 %v223, %v224
    %v226 = vrot.slane %v225, 1
    %v227 = vadd.f32 %v225, %v226
    %v228 = vsel %vm61, %v183, 0.0
    %v229 = vrot.slane %v228, 4
    %v230 = vadd.f32 %v228, %v229
    %v231 = vrot.slane %v230, 2
    %v232 = vadd.f32 %v230, %v231
    %v233 = vrot.slane %v232, 1
    %v234 = vadd.f32 %v232, %v233
    %v235 = vsel %vm61, %v199, 0.0
    %v236 = vrot.slane %v235, 4
    %v237 = vadd.f32 %v235, %v236
    %v238 = vrot.slane %v237, 2
    %v239 = vadd.f32 %v237, %v238
    %v240 = vrot.slane %v239, 1
    %v241 = vadd.f32 %v239, %v240
    %v242 = vsel %vm61, %v184, 0.0
    %v243 = vrot.slane %v242, 4
    %v244 = vadd.f32 %v242, %v243
    %v245 = vrot.slane %v244, 2
    %v246 = vadd.f32 %v244, %v245
    %v247 = vrot.slane %v246, 1
    %v248 = vadd.f32 %v246, %v247
    %v249 = vsel %vm61, %v200, 0.0
    %v250 = vrot.slane %v249, 4
    %v251 = vadd.f32 %v249, %v250
    %v252 = vrot.slane %v251, 2
    %v253 = vadd.f32 %v251, %v252
    %v254 = vrot.slane %v253, 1
    %v255 = vadd.f32 %v253, %v254
    %v256 = vsel %vm61, %v185, 0.0
    %v257 = vrot.slane %v256, 4
    %v258 = vadd.f32 %v256, %v257
    %v259 = vrot.slane %v258, 2
    %v260 = vadd.f32 %v258, %v259
    %v261 = vrot.slane %v260, 1
    %v262 = vadd.f32 %v260, %v261
    %v263 = vsel %vm61, %v201, 0.0
    %v264 = vrot.slane %v263, 4
    %v265 = vadd.f32 %v263, %v264
    %v266 = vrot.slane %v265, 2
    %v267 = vadd.f32 %v265, %v266
    %v268 = vrot.slane %v267, 1
    %v269 = vadd.f32 %v267, %v268
    %v270 = vsel %vm61, %v186, 0.0
    %v271 = vrot.slane %v270, 4
    %v272 = vadd.f32 %v270, %v271
    %v273 = vrot.slane %v272, 2
    %v274 = vadd.f32 %v272, %v273
    %v275 = vrot.slane %v274, 1
    %v276 = vadd.f32 %v274, %v275
    %v277 = vsel %vm61, %v202, 0.0
    %v278 = vrot.slane %v277, 4
    %v279 = vadd.f32 %v277, %v278
    %v280 = vrot.slane %v279, 2
    %v281 = vadd.f32 %v279, %v280
    %v282 = vrot.slane %v281, 1
    %v283 = vadd.f32 %v281, %v282
    %v284 = vsel %vm61, %v187, 0.0
    %v285 = vrot.slane %v284, 4
    %v286 = vadd.f32 %v284, %v285
    %v287 = vrot.slane %v286, 2
    %v288 = vadd.f32 %v286, %v287
    %v289 = vrot.slane %v288, 1
    %v290 = vadd.f32 %v288, %v289
    %v291 = vsel %vm61, %v203, 0.0
    %v292 = vrot.slane %v291, 4
    %v293 = vadd.f32 %v291, %v292
    %v294 = vrot.slane %v293, 2
    %v295 = vadd.f32 %v293, %v294
    %v296 = vrot.slane %v295, 1
    %v297 = vadd.f32 %v295, %v296
    %v298 = vsel %vm61, %v188, 0.0
    %v299 = vrot.slane %v298, 4
    %v300 = vadd.f32 %v298, %v299
    %v301 = vrot.slane %v300, 2
    %v302 = vadd.f32 %v300, %v301
    %v303 = vrot.slane %v302, 1
    %v304 = vadd.f32 %v302, %v303
    %v305 = vsel %vm61, %v204, 0.0
    %v306 = vrot.slane %v305, 4
    %v307 = vadd.f32 %v305, %v306
    %v308 = vrot.slane %v307, 2
    %v309 = vadd.f32 %v307, %v308
    %v310 = vrot.slane %v309, 1
    %v311 = vadd.f32 %v309, %v310
    %v312 = vsel %vm61, %v189, 0.0
    %v313 = vrot.slane %v312, 4
    %v314 = vadd.f32 %v312, %v313
    %v315 = vrot.slane %v314, 2
    %v316 = vadd.f32 %v314, %v315
    %v317 = vrot.slane %v316, 1
    %v318 = vadd.f32 %v316, %v317
    %v319 = vsel %vm61, %v205, 0.0
    %v320 = vrot.slane %v319, 4
    %v321 = vadd.f32 %v319, %v320
    %v322 = vrot.slane %v321, 2
    %v323 = vadd.f32 %v321, %v322
    %v324 = vrot.slane %v323, 1
    %v325 = vadd.f32 %v323, %v324
    %vm342 = vcmask 1041409
    %v343 = vsel %vm342, %v234, %v220
    %vm344 = vcmask 1042434
    %v345 = vsel %vm344, %v248, %v343
    %vm346 = vcmask 1043459
    %v347 = vsel %vm346, %v262, %v345
    %v348 = vsel %vm342, %v241, %v227
    %v349 = vsel %vm344, %v255, %v348
    %v350 = vsel %vm346, %v269, %v349
    %v351 = vsel %vm342, %v290, %v276
    %v352 = vsel %vm344, %v304, %v351
    %v353 = vsel %vm346, %v318, %v352
    %v354 = vsel %vm342, %v297, %v283
    %v355 = vsel %vm344, %v311, %v354
    %v356 = vsel %vm346, %v325, %v355
    %v361 = vsel %vm61, %v347, 0.0
    %v362 = vsel %vm61, %v350, 0.0
    %v363 = vadd.f32 %v361, %v362
    %364 = vadd.xlane.f32.xlu0 %v363
    %v365 = vpop.xlane.xlu0 %364
    %v366 = vsel %vm61, %v353, 0.0
    %v367 = vsel %vm61, %v356, 0.0
    %v368 = vadd.f32 %v366, %v367
    %369 = vadd.xlane.f32.xlu0 %v368
    %v370 = vpop.xlane.xlu0 %369
    %v371 = vmul.f32 %v365, 0.00390625
    %v372 = vmul.f32 %v370, 0.00390625
    %v375 = vrot.slane %v371, 1
    %v376 = vrot.slane %v371, 2
    %v377 = vrot.slane %v371, 3
    %v378 = vrot.slane %v372, 1
    %v379 = vrot.slane %v372, 2
    %v380 = vrot.slane %v372, 3
    %v389 = vsub.f32 %v220, %v371
    %v390 = vsub.f32 %v227, %v371
    %v391 = vsub.f32 %v234, %v375
    %v392 = vsub.f32 %v241, %v375
    %v393 = vsub.f32 %v248, %v376
    %v394 = vsub.f32 %v255, %v376
    %v395 = vsub.f32 %v262, %v377
    %v396 = vsub.f32 %v269, %v377
    %v397 = vsub.f32 %v276, %v372
    %v398 = vsub.f32 %v283, %v372
    %v399 = vsub.f32 %v290, %v378
    %v400 = vsub.f32 %v297, %v378
    %v401 = vsub.f32 %v304, %v379
    %v402 = vsub.f32 %v311, %v379
    %v403 = vsub.f32 %v318, %v380
    %v404 = vsub.f32 %v325, %v380
    %v405 = vmul.f32 %v389, %v389
    %v406 = vmul.f32 %v390, %v390
    %v407 = vmul.f32 %v391, %v391
    %v408 = vmul.f32 %v392, %v392
    %v409 = vmul.f32 %v393, %v393
    %v410 = vmul.f32 %v394, %v394
    %v411 = vmul.f32 %v395, %v395
    %v412 = vmul.f32 %v396, %v396
    %v413 = vmul.f32 %v397, %v397
    %v414 = vmul.f32 %v398, %v398
    %v415 = vmul.f32 %v399, %v399
    %v416 = vmul.f32 %v400, %v400
    %v417 = vmul.f32 %v401, %v401
    %v418 = vmul.f32 %v402, %v402
    %v419 = vmul.f32 %v403, %v403
    %v420 = vmul.f32 %v404, %v404
    %v437 = vrot.slane %v407, 7
    %v438 = vsel %vm342, %v437, %v405
    %v439 = vrot.slane %v409, 6
    %v440 = vsel %vm344, %v439, %v438
    %v441 = vrot.slane %v411, 5
    %v442 = vsel %vm346, %v441, %v440
    %v443 = vrot.slane %v408, 7
    %v444 = vsel %vm342, %v443, %v406
    %v445 = vrot.slane %v410, 6
    %v446 = vsel %vm344, %v445, %v444
    %v447 = vrot.slane %v412, 5
    %v448 = vsel %vm346, %v447, %v446
    %v449 = vrot.slane %v415, 7
    %v450 = vsel %vm342, %v449, %v413
    %v451 = vrot.slane %v417, 6
    %v452 = vsel %vm344, %v451, %v450
    %v453 = vrot.slane %v419, 5
    %v454 = vsel %vm346, %v453, %v452
    %v455 = vrot.slane %v416, 7
    %v456 = vsel %vm342, %v455, %v414
    %v457 = vrot.slane %v418, 6
    %v458 = vsel %vm344, %v457, %v456
    %v459 = vrot.slane %v420, 5
    %v460 = vsel %vm346, %v459, %v458
    %v465 = vsel %vm61, %v442, 0.0
    %v466 = vsel %vm61, %v448, 0.0
    %v467 = vadd.f32 %v465, %v466
    %468 = vadd.xlane.f32.xlu0 %v467
    %v469 = vpop.xlane.xlu0 %468
    %v470 = vsel %vm61, %v454, 0.0
    %v471 = vsel %vm61, %v460, 0.0
    %v472 = vadd.f32 %v470, %v471
    %473 = vadd.xlane.f32.xlu0 %v472
    %v474 = vpop.xlane.xlu0 %473
    %v475 = vmul.f32 %v469, 0.003921569
    %v476 = vmul.f32 %v474, 0.003921569
    %v477 = vrsqrt.pop %v475
    %v478 = vmul.f32 %v475, %v477
    %vm479 = vcmp.eq.f32.partialorder %v475, inf
    %v480 = vsel %vm479, %v475, %v478
    %vm481 = vcmp.eq.f32.partialorder %v475, 0.0
    %v482 = vand.u32 %v475, 2147483648
    %v483 = vsel %vm481, %v482, %v480
    %v484 = vrsqrt.pop %v476
    %v485 = vmul.f32 %v476, %v484
    %vm486 = vcmp.eq.f32.partialorder %v476, inf
    %v487 = vsel %vm486, %v476, %v485
    %vm488 = vcmp.eq.f32.partialorder %v476, 0.0
    %v489 = vand.u32 %v476, 2147483648
    %v490 = vsel %vm488, %v489, %v487
    %v491 = vadd.f32 %v483, 1e-05
    %v492 = vadd.f32 %v490, 1e-05
    %v493 = vrcp.pop %v491
    %v494 = vmul.f32 1.0, %v493
    %v495 = vrcp.pop %v492
    %v496 = vmul.f32 1.0, %v495
    %v499 = vrot.slane %v494, 1
    %v500 = vrot.slane %v494, 2
    %v501 = vrot.slane %v494, 3
    %v502 = vrot.slane %v496, 1
    %v503 = vrot.slane %v496, 2
    %v504 = vrot.slane %v496, 3
    %v513 = vmul.f32 %v389, %v494
    %v514 = vmul.f32 %v390, %v494
    %v515 = vmul.f32 %v391, %v499
    %v516 = vmul.f32 %v392, %v499
    %v517 = vmul.f32 %v393, %v500
    %v518 = vmul.f32 %v394, %v500
    %v519 = vmul.f32 %v395, %v501
    %v520 = vmul.f32 %v396, %v501
    %v521 = vmul.f32 %v397, %v496
    %v522 = vmul.f32 %v398, %v496
    %v523 = vmul.f32 %v399, %v502
    %v524 = vmul.f32 %v400, %v502
    %v525 = vmul.f32 %v401, %v503
    %v526 = vmul.f32 %v402, %v503
    %v527 = vmul.f32 %v403, %v504
    %v528 = vmul.f32 %v404, %v504
    %v529 = vld [vmem:[%s1] sm:$0xf]
    %531 = vset.pattern.permute.xlu0 0
    %532 = vperm.xlu0 %531, %v529
    %v533 = vpop.permute.xlu0 %532
    %v534 = vrot.slane %v533, 1
    %v535 = vrot.slane %v533, 2
    %v536 = vrot.slane %v533, 3
    %v541 = vmul.f32 %v513, %v533
    %v542 = vmul.f32 %v514, %v533
    %v543 = vmul.f32 %v515, %v534
    %v544 = vmul.f32 %v516, %v534
    %v545 = vmul.f32 %v517, %v535
    %v546 = vmul.f32 %v518, %v535
    %v547 = vmul.f32 %v519, %v536
    %v548 = vmul.f32 %v520, %v536
    %v549 = vmul.f32 %v521, %v533
    %v550 = vmul.f32 %v522, %v533
    %v551 = vmul.f32 %v523, %v534
    %v552 = vmul.f32 %v524, %v534
    %v553 = vmul.f32 %v525, %v535
    %v554 = vmul.f32 %v526, %v535
    %v555 = vmul.f32 %v527, %v536
    %v556 = vmul.f32 %v528, %v536
    %v557 = vld [vmem:[%s2] sm:$0xf]
    %559 = vset.pattern.permute.xlu0 0
    %560 = vperm.xlu0 %559, %v557
    %v561 = vpop.permute.xlu0 %560
    %v562 = vrot.slane %v561, 1
    %v563 = vrot.slane %v561, 2
    %v564 = vrot.slane %v561, 3
    %v569 = vadd.f32 %v541, %v561
    %v570 = vadd.f32 %v542, %v561
    %v571 = vadd.f32 %v543, %v562
    %v572 = vadd.f32 %v544, %v562
    %v573 = vadd.f32 %v545, %v563
    %v574 = vadd.f32 %v546, %v563
    %v575 = vadd.f32 %v547, %v564
    %v576 = vadd.f32 %v548, %v564
    %v577 = vadd.f32 %v549, %v561
    %v578 = vadd.f32 %v550, %v561
    %v579 = vadd.f32 %v551, %v562
    %v580 = vadd.f32 %v552, %v562
    %v581 = vadd.f32 %v553, %v563
    %v582 = vadd.f32 %v554, %v563
    %v583 = vadd.f32 %v555, %v564
    %v584 = vadd.f32 %v556, %v564
    %v585 = vmul.f32 %v569, 0.5
    %v586 = vmul.f32 %v570, 0.5
    %v587 = vmul.f32 %v571, 0.5
    %v588 = vmul.f32 %v572, 0.5
    %v589 = vmul.f32 %v573, 0.5
    %v590 = vmul.f32 %v574, 0.5
    %v591 = vmul.f32 %v575, 0.5
    %v592 = vmul.f32 %v576, 0.5
    %v593 = vmul.f32 %v577, 0.5
    %v594 = vmul.f32 %v578, 0.5
    %v595 = vmul.f32 %v579, 0.5
    %v596 = vmul.f32 %v580, 0.5
    %v597 = vmul.f32 %v581, 0.5
    %v598 = vmul.f32 %v582, 0.5
    %v599 = vmul.f32 %v583, 0.5
    %v600 = vmul.f32 %v584, 0.5
    %v601 = vtanh.pop %v585
    %v602 = vtanh.pop %v586
    %v603 = vtanh.pop %v587
    %v604 = vtanh.pop %v588
    %v605 = vtanh.pop %v589
    %v606 = vtanh.pop %v590
    %v607 = vtanh.pop %v591
    %v608 = vtanh.pop %v592
    %v609 = vtanh.pop %v593
    %v610 = vtanh.pop %v594
    %v611 = vtanh.pop %v595
    %v612 = vtanh.pop %v596
    %v613 = vtanh.pop %v597
    %v614 = vtanh.pop %v598
    %v615 = vtanh.pop %v599
    %v616 = vtanh.pop %v600
    %v617 = vadd.f32 %v601, 1.0
    %v618 = vadd.f32 %v602, 1.0
    %v619 = vadd.f32 %v603, 1.0
    %v620 = vadd.f32 %v604, 1.0
    %v621 = vadd.f32 %v605, 1.0
    %v622 = vadd.f32 %v606, 1.0
    %v623 = vadd.f32 %v607, 1.0
    %v624 = vadd.f32 %v608, 1.0
    %v625 = vadd.f32 %v609, 1.0
    %v626 = vadd.f32 %v610, 1.0
    %v627 = vadd.f32 %v611, 1.0
    %v628 = vadd.f32 %v612, 1.0
    %v629 = vadd.f32 %v613, 1.0
    %v630 = vadd.f32 %v614, 1.0
    %v631 = vadd.f32 %v615, 1.0
    %v632 = vadd.f32 %v616, 1.0
    %v633 = vmul.f32 %v617, 0.5
    %v634 = vmul.f32 %v618, 0.5
    %v635 = vmul.f32 %v619, 0.5
    %v636 = vmul.f32 %v620, 0.5
    %v637 = vmul.f32 %v621, 0.5
    %v638 = vmul.f32 %v622, 0.5
    %v639 = vmul.f32 %v623, 0.5
    %v640 = vmul.f32 %v624, 0.5
    %v641 = vmul.f32 %v625, 0.5
    %v642 = vmul.f32 %v626, 0.5
    %v643 = vmul.f32 %v627, 0.5
    %v644 = vmul.f32 %v628, 0.5
    %v645 = vmul.f32 %v629, 0.5
    %v646 = vmul.f32 %v630, 0.5
    %v647 = vmul.f32 %v631, 0.5
    %v648 = vmul.f32 %v632, 0.5
    %v649 = vlaneseq
    %v650 = vshrl.u32 %v649, 7
    %v651 = vsub.s32 0, %v650
    %v652 = vrot.slane %v633, %v651
    %v653 = vlaneseq
    %v654 = vshrl.u32 %v653, 7
    %v655 = vsub.s32 0, %v654
    %v656 = vrot.slane %v634, %v655
    %v657 = vlaneseq
    %v658 = vshrl.u32 %v657, 7
    %v659 = vsub.s32 0, %v658
    %v660 = vrot.slane %v635, %v659
    %v661 = vlaneseq
    %v662 = vshrl.u32 %v661, 7
    %v663 = vsub.s32 0, %v662
    %v664 = vrot.slane %v636, %v663
    %v665 = vlaneseq
    %v666 = vshrl.u32 %v665, 7
    %v667 = vsub.s32 0, %v666
    %v668 = vrot.slane %v637, %v667
    %v669 = vlaneseq
    %v670 = vshrl.u32 %v669, 7
    %v671 = vsub.s32 0, %v670
    %v672 = vrot.slane %v638, %v671
    %v673 = vlaneseq
    %v674 = vshrl.u32 %v673, 7
    %v675 = vsub.s32 0, %v674
    %v676 = vrot.slane %v639, %v675
    %v677 = vlaneseq
    %v678 = vshrl.u32 %v677, 7
    %v679 = vsub.s32 0, %v678
    %v680 = vrot.slane %v640, %v679
    %v681 = vlaneseq
    %v682 = vshrl.u32 %v681, 7
    %v683 = vsub.s32 0, %v682
    %v684 = vrot.slane %v641, %v683
    %v685 = vlaneseq
    %v686 = vshrl.u32 %v685, 7
    %v687 = vsub.s32 0, %v686
    %v688 = vrot.slane %v642, %v687
    %v689 = vlaneseq
    %v690 = vshrl.u32 %v689, 7
    %v691 = vsub.s32 0, %v690
    %v692 = vrot.slane %v643, %v691
    %v693 = vlaneseq
    %v694 = vshrl.u32 %v693, 7
    %v695 = vsub.s32 0, %v694
    %v696 = vrot.slane %v644, %v695
    %v697 = vlaneseq
    %v698 = vshrl.u32 %v697, 7
    %v699 = vsub.s32 0, %v698
    %v700 = vrot.slane %v645, %v699
    %v701 = vlaneseq
    %v702 = vshrl.u32 %v701, 7
    %v703 = vsub.s32 0, %v702
    %v704 = vrot.slane %v646, %v703
    %v705 = vlaneseq
    %v706 = vshrl.u32 %v705, 7
    %v707 = vsub.s32 0, %v706
    %v708 = vrot.slane %v647, %v707
    %v709 = vlaneseq
    %v710 = vshrl.u32 %v709, 7
    %v711 = vsub.s32 0, %v710
    %v712 = vrot.slane %v648, %v711
    %v729 = vcombine.low %v652, %v656
    %v730 = vcombine.low %v660, %v664
    %v731 = vcombine.low %v668, %v672
    %v732 = vcombine.low %v676, %v680
    %v733 = vcombine.low %v684, %v688
    %v734 = vcombine.low %v692, %v696
    %v735 = vcombine.low %v700, %v704
    %v736 = vcombine.low %v708, %v712
    %v745 = vmul.f32 %v29, %v729
    %v746 = vmul.f32 %v30, %v730
    %v747 = vmul.f32 %v31, %v731
    %v748 = vmul.f32 %v32, %v732
    %v749 = vmul.f32 %v33, %v733
    %v750 = vmul.f32 %v34, %v734
    %v751 = vmul.f32 %v35, %v735
    %v752 = vmul.f32 %v36, %v736
    %753 = vst [vmem:[#allocation5] sm:$0xff] %v745
    %754 = vst [vmem:[#allocation5 + $0x8] sm:$0xff] %v746
    %755 = vst [vmem:[#allocation5 + $0x10] sm:$0xff] %v747
    %756 = vst [vmem:[#allocation5 + $0x18] sm:$0xff] %v748
    %757 = vst [vmem:[#allocation5 + $0x20] sm:$0xff] %v749
    %758 = vst [vmem:[#allocation5 + $0x28] sm:$0xff] %v750
    %759 = vst [vmem:[#allocation5 + $0x30] sm:$0xff] %v751
    %760 = vst [vmem:[#allocation5 + $0x38] sm:$0xff] %v752
    // Predicated region
    $region18: #{tpu_custom_call.1} parent=1 // pred_check
      _
    $region19: #{tpu_custom_call.1} parent=1 // pred_check_branch
      %762 = sbr.rel (0) target = $region21
    $region20: #{tpu_custom_call.1} parent=1 // pred_region
      %s764 = ssub.s32 1024, 1024
      %765 = vsyncadd [#allocation4], %s764
      %s766 = sshll.u32 [#allocation5], 4
      %s767 = int_to_ptr.vmem [resolvable:$true] %s766
      %772 = dma.vmem_to_hbm [thread:$0]  %s767, 1024, %s3, [#allocation4], 128, 128, 8
    $region21: #{tpu_custom_call.1} parent=1 // pred_fallthru
      _
    // Predicated region
    $region22: #{tpu_custom_call.1} parent=1 // pred_check
      _
    $region23: #{tpu_custom_call.1} parent=1 // pred_check_branch
      %774 = sbr.rel (0) target = $region25
    $region24: #{tpu_custom_call.1} parent=1 // pred_region
      %775 = dma.done [#allocation4], 1024
    $region25: #{tpu_custom_call.1} parent=1 // pred_fallthru
      _
    %776 = vsyncpa [#allocation3], 1
    %777 = vsyncpa [#allocation4], 1

</llo_original>
